<compile_context>
chip_gen: v7x
topology: tpu7x:2x2x1
jax: 0.10.0
libtpu: 0.0.40
codegen_flags: <defaults>
</compile_context>

<pallas_src>
import functools
import math

import numpy as np
import jax
import jax.numpy as jnp
from jax import lax
from jax.experimental import pallas as pl
from jax.experimental.pallas import tpu as pltpu

_NEG_BIG = -1e30  # finite "minus infinity" for masking (avoids inf-inf NaNs)


def _ntxent_kernel(row_ref, partner_ref, col_ref, out_ref, m_sc, l_sc, *,
                   n_valid, tile_m, tile_n):
    i = pl.program_id(0)          # row-tile index ("parallel")
    j = pl.program_id(1)          # streamed column-block index ("arbitrary")
    nj = pl.num_programs(1)

    @pl.when(j == 0)
    def _init():
        m_sc[...] = jnp.full(m_sc.shape, _NEG_BIG, dtype=jnp.float32)
        l_sc[...] = jnp.zeros(l_sc.shape, dtype=jnp.float32)

    # Rows/cols already hold z_hat / sqrt(T)  ->  s == cos(z_a, z_b) / T.
    # MXU matmul in the input dtype, f32 accumulation.
    s = lax.dot_general(
        row_ref[...], col_ref[...],
        dimension_numbers=(((1,), (1,)), ((), ())),
        preferred_element_type=jnp.float32,
    )  # (tile_m, tile_n)

    # Exclude self-similarity (k == j) and zero-padded columns from the
    # denominator.  Per-tile iotas only -- no (N, N) temporaries.
    row_ids = i * tile_m + lax.broadcasted_iota(jnp.int32, (tile_m, tile_n), 0)
    col_ids = j * tile_n + lax.broadcasted_iota(jnp.int32, (tile_m, tile_n), 1)
    invalid = (row_ids == col_ids) | (col_ids >= n_valid)
    s = jnp.where(invalid, _NEG_BIG, s)

    # Online (flash-style) logsumexp update.
    m_prev = m_sc[...]
    m_new = jnp.maximum(m_prev, jnp.max(s, axis=-1, keepdims=True))
    alpha = jnp.exp(m_prev - m_new)
    p = jnp.exp(s - m_new)
    l_sc[...] = alpha * l_sc[...] + jnp.sum(p, axis=-1, keepdims=True)
    m_sc[...] = m_new

    @pl.when(j == nj - 1)
    def _finalize():
        # Positive logit straight from the representation: <z_k, z_partner_k>
        # with the 1/T fold already applied (partner of row k is row (k+B)%2B).
        pos = jnp.sum(
            row_ref[...].astype(jnp.float32) *
            partner_ref[...].astype(jnp.float32),
            axis=-1, keepdims=True)                         # (tile_m, 1)
        lse = m_sc[...] + jnp.log(l_sc[...])
        per_row = lse - pos                                 # -log(num/den) per row
        rvalid = (i * tile_m +
                  lax.broadcasted_iota(jnp.int32, (tile_m, 1), 0)) < n_valid
        out_ref[...] = jnp.where(rvalid, per_row, 0.0)


def _round_up(x, m):
    return (x + m - 1) // m * m


def ntxent_loss(z_i, z_j, temperature=1.0, *, tile_m=None, tile_n=None):
    """NT-Xent loss matching the reference PyTorch `NTXent.forward(z_i, z_j)`."""
    B, D = z_i.shape
    N = 2 * B
    in_dtype = z_i.dtype

    # --- O(N*D) prep in the wrapper: normalize once, fold 1/sqrt(T), pad. ---
    z = jnp.concatenate([z_i, z_j], axis=0).astype(jnp.float32)
    norm = jnp.sqrt(jnp.sum(z * z, axis=-1, keepdims=True))
    z_hat = z / jnp.maximum(norm, 1e-8)          # F.cosine_similarity eps clamp
    zs = (z_hat * (1.0 / math.sqrt(float(temperature)))).astype(in_dtype)
    zs_partner = jnp.concatenate([zs[B:], zs[:B]], axis=0)   # row k <-> (k+B)%2B

    if tile_m is None:
        tile_m = min(256, _round_up(N, 8))
    if tile_n is None:
        tile_n = min(256, _round_up(N, 8))
    tile_m = _round_up(int(tile_m), 8)
    tile_n = _round_up(int(tile_n), 8)

    Np = _round_up(N, math.lcm(tile_m, tile_n))   # padded rows/cols
    Dp = _round_up(D, 128)                        # lane-aligned feature dim

    def pad(a):
        return jnp.pad(a, ((0, Np - N), (0, Dp - D)))

    zs_p = pad(zs)
    zsp_p = pad(zs_partner)

    grid_i = Np // tile_m
    grid_j = Np // tile_n

    kernel = functools.partial(_ntxent_kernel, n_valid=N,
                               tile_m=tile_m, tile_n=tile_n)

    itemsize = jnp.dtype(in_dtype).itemsize
    cost = pl.CostEstimate(
        flops=int(2 * Np * Np * Dp + 6 * Np * Np),
        transcendentals=int(Np * Np),
        bytes_accessed=int((grid_i + 2) * Np * Dp * itemsize + Np * 4),
    )

    per_row = pl.pallas_call(
        kernel,
        out_shape=jax.ShapeDtypeStruct((Np, 1), jnp.float32),
        grid_spec=pltpu.PrefetchScalarGridSpec(
            num_scalar_prefetch=0,
            grid=(grid_i, grid_j),
            in_specs=[
                pl.BlockSpec((tile_m, Dp), lambda i, j: (i, 0)),  # row block
                pl.BlockSpec((tile_m, Dp), lambda i, j: (i, 0)),  # partner rows
                pl.BlockSpec((tile_n, Dp), lambda i, j: (j, 0)),  # streamed cols
            ],
            out_specs=pl.BlockSpec((tile_m, 1), lambda i, j: (i, 0)),
            scratch_shapes=[
                pltpu.VMEM((tile_m, 1), jnp.float32),   # running max
                pltpu.VMEM((tile_m, 1), jnp.float32),   # running sum
            ],
        ),
        compiler_params=pltpu.CompilerParams(
            dimension_semantics=("parallel", "arbitrary"),
            vmem_limit_bytes=48 * 1024 * 1024,   # safe on v5e/v6e/v7x
        ),
        cost_estimate=cost,
    )(zs_p, zsp_p, zs_p)

    return jnp.sum(per_row) / (2.0 * B)


def ntxent_ref(z_i, z_j, temperature=1.0):
    """Pure numpy mirror of the PyTorch NTXent.forward."""
    z_i = np.asarray(z_i, dtype=np.float64)
    z_j = np.asarray(z_j, dtype=np.float64)
    B = z_i.shape[0]
    z = np.concatenate([z_i, z_j], axis=0)
    zn = z / np.maximum(np.linalg.norm(z, axis=1, keepdims=True), 1e-8)
    sim = zn @ zn.T
    positives = np.concatenate([np.diag(sim, B), np.diag(sim, -B)])
    mask = ~np.eye(2 * B, dtype=bool)
    num = np.exp(positives / temperature)
    den = (mask * np.exp(sim / temperature)).sum(axis=1)
    return float(np.sum(-np.log(num / den)) / (2 * B))


if __name__ == "__main__":
    key = jax.random.PRNGKey(0)
    k1, k2, k3, k4 = jax.random.split(key, 4)

    # Small shapes consistent with the module: batch=8, hidden=32.
    B, D = 8, 32
    z_i = jax.random.normal(k1, (B, D), dtype=jnp.float32)
    z_j = jax.random.normal(k2, (B, D), dtype=jnp.float32)

    loss = jax.block_until_ready(ntxent_loss(z_i, z_j, temperature=0.5))
    ref = ntxent_ref(z_i, z_j, temperature=0.5)
    assert np.allclose(float(loss), ref, rtol=1e-4, atol=1e-5), (float(loss), ref)

    # Same inputs through the multi-tile online-logsumexp path (grid 2x2).
    loss_tiled = jax.block_until_ready(
        ntxent_loss(z_i, z_j, temperature=0.5, tile_m=8, tile_n=8))
    assert np.allclose(float(loss_tiled), ref, rtol=1e-4, atol=1e-5), (
        float(loss_tiled), ref)

    # Ragged batch: exercises row/column padding masks, default temperature.
    B2, D2 = 5, 24
    z_i2 = jax.random.normal(k3, (B2, D2), dtype=jnp.float32)
    z_j2 = jax.random.normal(k4, (B2, D2), dtype=jnp.float32)
    loss2 = jax.block_until_ready(ntxent_loss(z_i2, z_j2))
    ref2 = ntxent_ref(z_i2, z_j2)
    assert np.allclose(float(loss2), ref2, rtol=1e-4, atol=1e-5), (
        float(loss2), ref2)

    print("KERNEL_OK")
</pallas_src>

<mosaic_0001>
module attributes {stable_mosaic.version = 11 : i64} {
  func.func @_ntxent_kernel(%arg0: i32, %arg1: i32, %arg2: memref<16x128xf32, #tpu.memory_space<vmem>>, %arg3: memref<16x128xf32, #tpu.memory_space<vmem>>, %arg4: memref<16x128xf32, #tpu.memory_space<vmem>>, %arg5: memref<16x1xf32, #tpu.memory_space<vmem>>, %arg6: memref<16x1xf32, #tpu.memory_space<vmem>>, %arg7: memref<16x1xf32, #tpu.memory_space<vmem>>) attributes {dimension_semantics = [#tpu.dimension_semantics<parallel>, #tpu.dimension_semantics<arbitrary>], iteration_bounds = array<i64: 1, 1>, scalar_prefetch = 0 : i64, scratch_operands = 2 : i64, tpu.core_type = #tpu.core_type<tc>, window_params = [{transform_indices = @transform_0, window_bounds = array<i64: 16, 128>}, {transform_indices = @transform_1, window_bounds = array<i64: 16, 128>}, {transform_indices = @transform_2, window_bounds = array<i64: 16, 128>}, {transform_indices = @transform_3, window_bounds = array<i64: 16, 1>}]} {
    %c0_i32 = arith.constant 0 : i32
    %0 = arith.cmpi eq, %arg1, %c0_i32 : i32
    %1 = arith.extui %0 : i1 to i32
    %c0_i32_0 = arith.constant 0 : i32
    %2 = arith.cmpi ne, %1, %c0_i32_0 : i32
    scf.if %2 {
      %cst_19 = arith.constant -1.000000e+30 : f32
      %39 = vector.broadcast %cst_19 : f32 to vector<16x1xf32>
      %c0_20 = arith.constant 0 : index
      %c0_21 = arith.constant 0 : index
      %40 = vector.load %arg6[%c0_20, %c0_21] : memref<16x1xf32, #tpu.memory_space<vmem>>, vector<16x1xf32>
      tpu.vector_store %arg6[%c0_20, %c0_21], %39 {strides = array<i32>} : memref<16x1xf32, #tpu.memory_space<vmem>>, vector<16x1xf32>,
      %cst_22 = arith.constant 0.000000e+00 : f32
      %41 = vector.broadcast %cst_22 : f32 to vector<16x1xf32>
      %c0_23 = arith.constant 0 : index
      %c0_24 = arith.constant 0 : index
      %42 = vector.load %arg7[%c0_23, %c0_24] : memref<16x1xf32, #tpu.memory_space<vmem>>, vector<16x1xf32>
      tpu.vector_store %arg7[%c0_23, %c0_24], %41 {strides = array<i32>} : memref<16x1xf32, #tpu.memory_space<vmem>>, vector<16x1xf32>,
    } else {
    }
    %c0 = arith.constant 0 : index
    %c0_1 = arith.constant 0 : index
    %3 = vector.load %arg2[%c0, %c0_1] : memref<16x128xf32, #tpu.memory_space<vmem>>, vector<16x128xf32>
    %c0_2 = arith.constant 0 : index
    %c0_3 = arith.constant 0 : index
    %4 = vector.load %arg4[%c0_2, %c0_3] : memref<16x128xf32, #tpu.memory_space<vmem>>, vector<16x128xf32>
    %cst = arith.constant dense<0.000000e+00> : vector<16x16xf32>
    %5 = tpu.matmul %3, %4, %cst {dimension_numbers = #tpu.dot_dimension_numbers<[1], [1], [0], [0], [0, 0, 1, 0], [], []>} : vector<16x128xf32>, vector<16x128xf32>, vector<16x16xf32> -> vector<16x16xf32>
    %c16_i32 = arith.constant 16 : i32
    %6 = arith.muli %arg0, %c16_i32 : i32
    %7 = tpu.iota {dimensions = array<i32: 0>} : vector<16x16xi32>
    %8 = vector.broadcast %6 : i32 to vector<16x16xi32>
    %9 = arith.addi %8, %7 : vector<16x16xi32>
    %c16_i32_4 = arith.constant 16 : i32
    %10 = arith.muli %arg1, %c16_i32_4 : i32
    %11 = tpu.iota {dimensions = array<i32: 1>} : vector<16x16xi32>
    %12 = vector.broadcast %10 : i32 to vector<16x16xi32>
    %13 = arith.addi %12, %11 : vector<16x16xi32>
    %14 = arith.cmpi eq, %9, %13 : vector<16x16xi32>
    %c16_i32_5 = arith.constant 16 : i32
    %15 = vector.broadcast %c16_i32_5 : i32 to vector<16x16xi32>
    %16 = arith.cmpi sge, %13, %15 : vector<16x16xi32>
    %17 = arith.ori %14, %16 : vector<16x16xi1>
    %cst_6 = arith.constant -1.000000e+30 : f32
    %18 = vector.broadcast %cst_6 : f32 to vector<16x16xf32>
    %19 = arith.select %17, %18, %5 : vector<16x16xi1>, vector<16x16xf32>
    %c0_7 = arith.constant 0 : index
    %c0_8 = arith.constant 0 : index
    %20 = vector.load %arg6[%c0_7, %c0_8] : memref<16x1xf32, #tpu.memory_space<vmem>>, vector<16x1xf32>
    %cst_9 = arith.constant dense<0xFF800000> : vector<16xf32>
    %21 = vector.multi_reduction <maximumf>, %19, %cst_9 [1] : vector<16x16xf32> to vector<16xf32>
    %22 = vector.shape_cast %21 : vector<16xf32> to vector<16x1xf32>
    %23 = arith.maximumf %20, %22 : vector<16x1xf32>
    %24 = arith.subf %20, %23 : vector<16x1xf32>
    %25 = math.exp %24 : vector<16x1xf32>
    %26 = vector.broadcast %23 : vector<16x1xf32> to vector<16x16xf32>
    %27 = arith.subf %19, %26 : vector<16x16xf32>
    %28 = math.exp %27 : vector<16x16xf32>
    %c0_10 = arith.constant 0 : index
    %c0_11 = arith.constant 0 : index
    %29 = vector.load %arg7[%c0_10, %c0_11] : memref<16x1xf32, #tpu.memory_space<vmem>>, vector<16x1xf32>
    %30 = arith.mulf %25, %29 : vector<16x1xf32>
    %cst_12 = arith.constant dense<0.000000e+00> : vector<16xf32>
    %31 = vector.multi_reduction <add>, %28, %cst_12 [1] : vector<16x16xf32> to vector<16xf32>
    %32 = vector.shape_cast %31 : vector<16xf32> to vector<16x1xf32>
    %33 = arith.addf %30, %32 : vector<16x1xf32>
    %c0_13 = arith.constant 0 : index
    %c0_14 = arith.constant 0 : index
    %34 = vector.load %arg7[%c0_13, %c0_14] : memref<16x1xf32, #tpu.memory_space<vmem>>, vector<16x1xf32>
    tpu.vector_store %arg7[%c0_13, %c0_14], %33 {strides = array<i32>} : memref<16x1xf32, #tpu.memory_space<vmem>>, vector<16x1xf32>,
    %c0_15 = arith.constant 0 : index
    %c0_16 = arith.constant 0 : index
    %35 = vector.load %arg6[%c0_15, %c0_16] : memref<16x1xf32, #tpu.memory_space<vmem>>, vector<16x1xf32>
    tpu.vector_store %arg6[%c0_15, %c0_16], %23 {strides = array<i32>} : memref<16x1xf32, #tpu.memory_space<vmem>>, vector<16x1xf32>,
    %c0_i32_17 = arith.constant 0 : i32
    %36 = arith.cmpi eq, %arg1, %c0_i32_17 : i32
    %37 = arith.extui %36 : i1 to i32
    %c0_i32_18 = arith.constant 0 : i32
    %38 = arith.cmpi ne, %37, %c0_i32_18 : i32
    scf.if %38 {
      %c0_19 = arith.constant 0 : index
      %c0_20 = arith.constant 0 : index
      %39 = vector.load %arg2[%c0_19, %c0_20] : memref<16x128xf32, #tpu.memory_space<vmem>>, vector<16x128xf32>
      %c0_21 = arith.constant 0 : index
      %c0_22 = arith.constant 0 : index
      %40 = vector.load %arg3[%c0_21, %c0_22] : memref<16x128xf32, #tpu.memory_space<vmem>>, vector<16x128xf32>
      %41 = arith.mulf %39, %40 : vector<16x128xf32>
      %cst_23 = arith.constant dense<0.000000e+00> : vector<16xf32>
      %42 = vector.multi_reduction <add>, %41, %cst_23 [1] : vector<16x128xf32> to vector<16xf32>
      %43 = vector.shape_cast %42 : vector<16xf32> to vector<16x1xf32>
      %c0_24 = arith.constant 0 : index
      %c0_25 = arith.constant 0 : index
      %44 = vector.load %arg6[%c0_24, %c0_25] : memref<16x1xf32, #tpu.memory_space<vmem>>, vector<16x1xf32>
      %c0_26 = arith.constant 0 : index
      %c0_27 = arith.constant 0 : index
      %45 = vector.load %arg7[%c0_26, %c0_27] : memref<16x1xf32, #tpu.memory_space<vmem>>, vector<16x1xf32>
      %46 = math.log %45 : vector<16x1xf32>
      %47 = arith.addf %44, %46 : vector<16x1xf32>
      %48 = arith.subf %47, %43 : vector<16x1xf32>
      %c16_i32_28 = arith.constant 16 : i32
      %49 = arith.muli %arg0, %c16_i32_28 : i32
      %50 = tpu.iota {dimensions = array<i32: 0>} : vector<16x1xi32>
      %51 = vector.broadcast %49 : i32 to vector<16x1xi32>
      %52 = arith.addi %51, %50 : vector<16x1xi32>
      %c16_i32_29 = arith.constant 16 : i32
      %53 = vector.broadcast %c16_i32_29 : i32 to vector<16x1xi32>
      %54 = arith.cmpi slt, %52, %53 : vector<16x1xi32>
      %cst_30 = arith.constant 0.000000e+00 : f32
      %55 = vector.broadcast %cst_30 : f32 to vector<16x1xf32>
      %56 = arith.select %54, %48, %55 : vector<16x1xi1>, vector<16x1xf32>
      %c0_31 = arith.constant 0 : index
      %c0_32 = arith.constant 0 : index
      %57 = vector.load %arg5[%c0_31, %c0_32] : memref<16x1xf32, #tpu.memory_space<vmem>>, vector<16x1xf32>
      tpu.vector_store %arg5[%c0_31, %c0_32], %56 {strides = array<i32>} : memref<16x1xf32, #tpu.memory_space<vmem>>, vector<16x1xf32>,
    } else {
    }
    return
  }
  func.func @transform_0(%arg0: i32, %arg1: i32) -> (i32, i32) {
    %c0_i32 = arith.constant 0 : i32
    %c0_i32_0 = arith.constant 0 : i32
    return %arg0, %c0_i32 : i32, i32
  }
  func.func @transform_1(%arg0: i32, %arg1: i32) -> (i32, i32) {
    %c0_i32 = arith.constant 0 : i32
    %c0_i32_0 = arith.constant 0 : i32
    return %arg0, %c0_i32 : i32, i32
  }
  func.func @transform_2(%arg0: i32, %arg1: i32) -> (i32, i32) {
    %c0_i32 = arith.constant 0 : i32
    %c0_i32_0 = arith.constant 0 : i32
    return %arg1, %c0_i32 : i32, i32
  }
  func.func @transform_3(%arg0: i32, %arg1: i32) -> (i32, i32) {
    %c0_i32 = arith.constant 0 : i32
    %c0_i32_0 = arith.constant 0 : i32
    return %arg0, %c0_i32 : i32, i32
  }
}

</mosaic_0001>

<llo_original>
// kernel: tpu_custom_call.1
$region0: #{tpu_custom_call.1}
  #allocation0 [shape = 'u32[]', space=smem, size = 0x4, offset = 0x4, fixed_abs, tag = 'smem constant byte address 0x4 - core index']
  #allocation1 [shape = 'u32[144,128]{1,0:T(1,128)}', space=vmem, size = 0x12000, scoped, tag = 'internal scratch']
  #allocation2 [shape = 'f32[16,1]{1,0:T(8,128)}', space=vmem, size = 0x2000, scoped, tag = 'scratch operand']
  #allocation3 [shape = 'f32[16,1]{1,0:T(8,128)}', space=vmem, size = 0x2000, scoped, tag = 'scratch operand']
  %s0 = inlined_call_operand.hbm [shape: f32[16,128], index: 0, kind: input, shape index: {}]
  %s1 = inlined_call_operand.hbm [shape: f32[16,128], index: 1, kind: input, shape index: {}]
  %s2 = inlined_call_operand.hbm [shape: f32[16,128], index: 2, kind: input, shape index: {}]
  %s3 = inlined_call_operand.vmem [shape: f32[16,1], index: 3, kind: output, shape index: {}]
  %s4 = sld [smem:[#allocation0]]
  $region42: #{tpu_custom_call.1} parent=0
    _
  %s6 = ssub.s32 1, %s4
  %s7 = scalar_select 0, %s6, %s4
  $region1: #{tpu_custom_call.1} parent=0
    #allocation4 [shape = 'u8[8192]{0}', space=vmem, size = 0x2000, scoped, tag = 'input window, operand 0, single buffered']
    #allocation5 [shape = 's32[1]{0}', space=sflag, size = 0x4, scoped, tag = 'scoped memory for tpu_custom_call.1']
    #allocation6 [shape = 'u8[8192]{0}', space=vmem, size = 0x2000, scoped, tag = 'input window, operand 1, single buffered']
    #allocation7 [shape = 's32[1]{0}', space=sflag, size = 0x4, scoped, tag = 'scoped memory for tpu_custom_call.1']
    #allocation8 [shape = 'u8[8192]{0}', space=vmem, size = 0x2000, scoped, tag = 'input window, operand 2, single buffered']
    %8 = vsyncpa [#allocation5], 0
    %9 = vsyncpa [#allocation7], 0
    // Predicated region
    $region2: #{tpu_custom_call.1} parent=1 // pred_check
      _
    $region3: #{tpu_custom_call.1} parent=1 // pred_check_branch
      %11 = sbr.rel (0) target = $region5
    $region4: #{tpu_custom_call.1} parent=1 // pred_region
      %s13 = ssub.s32 256, 256
      %14 = vsyncadd [#allocation5], %s13
      %s15 = sshll.u32 [#allocation4], 4
      %s16 = int_to_ptr.vmem [resolvable:$true] %s15
      %21 = dma.hbm_to_vmem [thread:$0]  %s0, 256, %s16, [#allocation5], 128, 128, 8
    $region5: #{tpu_custom_call.1} parent=1 // pred_fallthru
      _
    // Predicated region
    $region6: #{tpu_custom_call.1} parent=1 // pred_check
      _
    $region7: #{tpu_custom_call.1} parent=1 // pred_check_branch
      %23 = sbr.rel (0) target = $region9
    $region8: #{tpu_custom_call.1} parent=1 // pred_region
      %s25 = ssub.s32 256, 256
      %26 = vsyncadd [#allocation7], %s25
      %s27 = sshll.u32 [#allocation6], 4
      %s28 = int_to_ptr.vmem [resolvable:$true] %s27
      %33 = dma.hbm_to_vmem [thread:$0]  %s1, 256, %s28, [#allocation7], 128, 128, 8
    $region9: #{tpu_custom_call.1} parent=1 // pred_fallthru
      _
    // Predicated region
    $region10: #{tpu_custom_call.1} parent=1 // pred_check
      _
    $region11: #{tpu_custom_call.1} parent=1 // pred_check_branch
      %35 = sbr.rel (0) target = $region13
    $region12: #{tpu_custom_call.1} parent=1 // pred_region
      %s37 = ssub.s32 256, 256
      %38 = vsyncadd [#allocation7], %s37
      %s39 = sshll.u32 [#allocation8], 4
      %s40 = int_to_ptr.vmem [resolvable:$true] %s39
      %45 = dma.hbm_to_vmem [thread:$0]  %s2, 256, %s40, [#allocation7], 128, 128, 8
    $region13: #{tpu_custom_call.1} parent=1 // pred_fallthru
      _
    // Predicated region
    $region14: #{tpu_custom_call.1} parent=1 // pred_check
      _
    $region15: #{tpu_custom_call.1} parent=1 // pred_check_branch
      %47 = sbr.rel (0) target = $region17
    $region16: #{tpu_custom_call.1} parent=1 // pred_region
      %48 = dma.done [#allocation5], 256
    $region17: #{tpu_custom_call.1} parent=1 // pred_fallthru
      _
    // Predicated region
    $region18: #{tpu_custom_call.1} parent=1 // pred_check
      _
    $region19: #{tpu_custom_call.1} parent=1 // pred_check_branch
      %50 = sbr.rel (0) target = $region21
    $region20: #{tpu_custom_call.1} parent=1 // pred_region
      %51 = dma.done [#allocation7], 256
    $region21: #{tpu_custom_call.1} parent=1 // pred_fallthru
      _
    // Predicated region
    $region22: #{tpu_custom_call.1} parent=1 // pred_check
      _
    $region23: #{tpu_custom_call.1} parent=1 // pred_check_branch
      %53 = sbr.rel (0) target = $region25
    $region24: #{tpu_custom_call.1} parent=1 // pred_region
      %54 = dma.done [#allocation7], 256
    $region25: #{tpu_custom_call.1} parent=1 // pred_fallthru
      _
    %p55 = scmp.eq.s32.totalorder 0, 0
    // Predicated region
    $region26: #{tpu_custom_call.1} parent=1 // pred_check
      %p56 = pneg %p55
    $region27: #{tpu_custom_call.1} parent=1 // pred_check_branch
      %58 = sbr.rel (%p56) target = $region29
    $region28: #{tpu_custom_call.1} parent=1 // pred_region
      %vm59 = vcmask 7168
      %60 = vst.msk [vmem:[#allocation2] sm:$0xff] %vm59, -1e+30
      %61 = vst.msk [vmem:[#allocation2 + $0x8] sm:$0xff] %vm59, -1e+30
      %62 = vst.msk [vmem:[#allocation3] sm:$0xff] %vm59, 0.0
      %63 = vst.msk [vmem:[#allocation3 + $0x8] sm:$0xff] %vm59, 0.0
    $region29: #{tpu_custom_call.1} parent=1 // pred_fallthru
      _
    %v64 = vld [vmem:[#allocation4] sm:$0xff]
    %v65 = vld [vmem:[#allocation4 + $0x8] sm:$0xff]
    %v66 = vld [vmem:[#allocation8] sm:$0xff]
    %v67 = vld [vmem:[#allocation8 + $0x8] sm:$0xff]
    %68 = vmatprep.subr.mxu0 0.0
    %69 = vmatpush1.xpose.msra.mxu0 %v66
    %70 = vmatprep.subr.mxu0 0.0
    %71 = vmatpush1.xpose.msra.mxu0 %v67
    %72 = vmatprep.subr.mxu0 0.0
    %73 = vmatpush1.xpose.msra.mxu0 0.0
    %74 = vmatprep.subr.mxu0 0.0
    %75 = vmatpush1.xpose.msra.mxu0 0.0
    %76 = vmatprep.subr.mxu0 0.0
    %77 = vmatpush1.xpose.msra.mxu0 0.0
    %78 = vmatprep.subr.mxu0 0.0
    %79 = vmatpush1.xpose.msra.mxu0 0.0
    %80 = vmatprep.subr.mxu0 0.0
    %81 = vmatpush1.xpose.msra.mxu0 0.0
    %82 = vmatprep.subr.mxu0 0.0
    %83 = vmatpush1.xpose.msra.mxu0 0.0
    %84 = vmatprep.subr.mxu0 0.0
    %85 = vmatpush1.xpose.msra.mxu0 0.0
    %86 = vmatprep.subr.mxu0 0.0
    %87 = vmatpush1.xpose.msra.mxu0 0.0
    %88 = vmatprep.subr.mxu0 0.0
    %89 = vmatpush1.xpose.msra.mxu0 0.0
    %90 = vmatprep.subr.mxu0 0.0
    %91 = vmatpush1.xpose.msra.mxu0 0.0
    %92 = vmatprep.subr.mxu0 0.0
    %93 = vmatpush1.xpose.msra.mxu0 0.0
    %94 = vmatprep.subr.mxu0 0.0
    %95 = vmatpush1.xpose.msra.mxu0 0.0
    %96 = vmatprep.subr.mxu0 0.0
    %97 = vmatpush1.xpose.msra.mxu0 0.0
    %98 = vmatprep.subr.mxu0 0.0
    %99 = vmatpush1.xpose.msra.mxu0 0.0
    %100 = vmatprep.subr.mxu0 0.0
    %101 = vmatpush1.xpose.msra.mxu0 0.0
    %102 = vmatprep.subr.mxu0 0.0
    %103 = vmatpush1.xpose.msra.mxu0 0.0
    %104 = vmatprep.subr.mxu0 0.0
    %105 = vmatpush1.xpose.msra.mxu0 0.0
    %106 = vmatprep.subr.mxu0 0.0
    %107 = vmatpush1.xpose.msra.mxu0 0.0
    %108 = vmatprep.subr.mxu0 0.0
    %109 = vmatpush1.xpose.msra.mxu0 0.0
    %110 = vmatprep.subr.mxu0 0.0
    %111 = vmatpush1.xpose.msra.mxu0 0.0
    %112 = vmatprep.subr.mxu0 0.0
    %113 = vmatpush1.xpose.msra.mxu0 0.0
    %114 = vmatprep.subr.mxu0 0.0
    %115 = vmatpush1.xpose.msra.mxu0 0.0
    %116 = vmatprep.subr.mxu0 0.0
    %117 = vmatpush1.xpose.msra.mxu0 0.0
    %118 = vmatprep.subr.mxu0 0.0
    %119 = vmatpush1.xpose.msra.mxu0 0.0
    %120 = vmatprep.subr.mxu0 0.0
    %121 = vmatpush1.xpose.msra.mxu0 0.0
    %122 = vmatprep.subr.mxu0 0.0
    %123 = vmatpush1.xpose.msra.mxu0 0.0
    %124 = vmatprep.subr.mxu0 0.0
    %125 = vmatpush1.xpose.msra.mxu0 0.0
    %126 = vmatprep.subr.mxu0 0.0
    %127 = vmatpush1.xpose.msra.mxu0 0.0
    %128 = vmatprep.subr.mxu0 0.0
    %129 = vmatpush1.xpose.msra.mxu0 0.0
    %130 = vmatprep.subr.mxu0 0.0
    %131 = vmatpush1.xpose.msra.mxu0 0.0
    %132 = vmatprep.mubr.f32.mxu0 0.0
    %133 = vmatmul.mubr.f32.gmra.mrb[0].mxu0 %v64
    %v134 = vpop.f32.mrb[0].mxu0
    %v135 = vadd.f32 0.0, %v134
    %v136 = vpop.f32.mrb[0].mxu0
    %137 = vmatprep.mubr.f32.mxu0 0.0
    %138 = vmatmul.mubr.f32.gmra.mrb[0].mxu0 %v65
    %v139 = vpop.f32.mrb[0].mxu0
    %v140 = vadd.f32 0.0, %v139
    %v141 = vpop.f32.mrb[0].mxu0
    %142 = vdwg.mxu0
    %s143 = smul.u32 0, 16
    %v144 = vlaneseq
    %v145 = vshrl.u32 %v144, 7
    %v146 = vadd.s32 %v145, 8
    %v147 = vstv %s143
    %v148 = vadd.s32 %v147, %v145
    %v149 = vadd.s32 %v147, %v146
    %s150 = smul.u32 0, 16
    %v151 = vlaneseq
    %v152 = vand.u32 %v151, 127
    %v153 = vstv %s150
    %v154 = vadd.s32 %v153, %v152
    %vm155 = vcmp.eq.s32.totalorder %v148, %v154
    %vm156 = vcmp.eq.s32.totalorder %v149, %v154
    %vm157 = vcmp.ge.s32.totalorder %v154, 16
    %vm158 = vmor %vm155, %vm157
    %vm159 = vmor %vm156, %vm157
    %v160 = vsel %vm158, -1e+30, %v135
    %v161 = vsel %vm159, -1e+30, %v140
    %v162 = vld [vmem:[#allocation2] sm:$0xff]
    %v163 = vld [vmem:[#allocation2 + $0x8] sm:$0xff]
    %vm164 = vcmask 130048
    %v165 = vsel %vm164, %v160, -inf
    %166 = vmax.xlane.f32.xlu0 %v165
    %v167 = vpop.xlane.xlu0 %166
    %v168 = vsel %vm164, %v161, -inf
    %169 = vmax.xlane.f32.xlu0 %v168
    %v170 = vpop.xlane.xlu0 %169
    %v171 = vmax.f32 %v162, %v167
    %v172 = vmax.f32 %v163, %v170
    %v173 = vsub.f32 %v162, %v171
    %v174 = vsub.f32 %v163, %v172
    %v175 = vmul.f32 %v173, 1.442695
    %v176 = vpow.pop %v175
    %v177 = vmul.f32 %v174, 1.442695
    %v178 = vpow.pop %v177
    %180 = vset.pattern.permute.xlu0 0
    %181 = vperm.xlu0 %180, %v171
    %v182 = vpop.permute.xlu0 %181
    %185 = vset.pattern.permute.xlu0 0
    %186 = vperm.xlu0 %185, %v172
    %v187 = vpop.permute.xlu0 %186
    %v189 = vsub.f32 %v160, %v182
    %v190 = vsub.f32 %v161, %v187
    %v191 = vmul.f32 %v189, 1.442695
    %v192 = vpow.pop %v191
    %v193 = vmul.f32 %v190, 1.442695
    %v194 = vpow.pop %v193
    %v195 = vld [vmem:[#allocation3] sm:$0xff]
    %v196 = vld [vmem:[#allocation3 + $0x8] sm:$0xff]
    %v197 = vmul.f32 %v176, %v195
    %v198 = vmul.f32 %v178, %v196
    %v199 = vsel %vm164, %v192, 0.0
    %200 = vadd.xlane.f32.xlu0 %v199
    %v201 = vpop.xlane.xlu0 %200
    %v202 = vsel %vm164, %v194, 0.0
    %203 = vadd.xlane.f32.xlu0 %v202
    %v204 = vpop.xlane.xlu0 %203
    %v205 = vadd.f32 %v197, %v201
    %v206 = vadd.f32 %v198, %v204
    %vm207 = vcmask 7168
    %208 = vst.msk [vmem:[#allocation3] sm:$0xff] %vm207, %v205
    %209 = vst.msk [vmem:[#allocation3 + $0x8] sm:$0xff] %vm207, %v206
    %210 = vst.msk [vmem:[#allocation2] sm:$0xff] %vm207, %v171
    %211 = vst.msk [vmem:[#allocation2 + $0x8] sm:$0xff] %vm207, %v172
    // Predicated region
    $region30: #{tpu_custom_call.1} parent=1 // pred_check
      %p212 = pneg %p55
    $region31: #{tpu_custom_call.1} parent=1 // pred_check_branch
      %214 = sbr.rel (%p212) target = $region33
    $region32: #{tpu_custom_call.1} parent=1 // pred_region
      %v215 = vld [vmem:[#allocation4] sm:$0xff]
      %v216 = vld [vmem:[#allocation4 + $0x8] sm:$0xff]
      %v217 = vld [vmem:[#allocation6] sm:$0xff]
      %v218 = vld [vmem:[#allocation6 + $0x8] sm:$0xff]
      %v219 = vmul.f32 %v215, %v217
      %v220 = vmul.f32 %v216, %v218
      %221 = vadd.xlane.f32.xlu0 %v219
      %v222 = vpop.xlane.xlu0 %221
      %223 = vadd.xlane.f32.xlu0 %v220
      %v224 = vpop.xlane.xlu0 %223
      %v225 = vld [vmem:[#allocation2] sm:$0xff]
      %v226 = vld [vmem:[#allocation2 + $0x8] sm:$0xff]
      %v227 = vld [vmem:[#allocation3] sm:$0xff]
      %v228 = vld [vmem:[#allocation3 + $0x8] sm:$0xff]
      %v229 = vlog2.pop %v227
      %v230 = vmul.f32 %v229, 0.6931472
      %v231 = vlog2.pop %v228
      %v232 = vmul.f32 %v231, 0.6931472
      %v233 = vadd.f32 %v225, %v230
      %v234 = vadd.f32 %v226, %v232
      %v235 = vsub.f32 %v233, %v222
      %v236 = vsub.f32 %v234, %v224
      %vm237 = vcmp.lt.s32.totalorder %v148, 16
      %vm238 = vcmp.lt.s32.totalorder %v149, 16
      %v239 = vsel %vm237, %v235, 0.0
      %v240 = vsel %vm238, %v236, 0.0
      %241 = vst.msk [vmem:[%s3] sm:$0xff] %vm207, %v239
      %242 = vst.msk [vmem:[%s3 + $0x8] sm:$0xff] %vm207, %v240
    $region33: #{tpu_custom_call.1} parent=1 // pred_fallthru
      _
    // Predicated region
    $region34: #{tpu_custom_call.1} parent=1 // pred_check
      _
    $region35: #{tpu_custom_call.1} parent=1 // pred_check_branch
      %244 = sbr.rel (0) target = $region37
    $region36: #{tpu_custom_call.1} parent=1 // pred_region
      _
    $region37: #{tpu_custom_call.1} parent=1 // pred_fallthru
      _
    // Predicated region
    $region38: #{tpu_custom_call.1} parent=1 // pred_check
      _
    $region39: #{tpu_custom_call.1} parent=1 // pred_check_branch
      %246 = sbr.rel (0) target = $region41
    $region40: #{tpu_custom_call.1} parent=1 // pred_region
      _
    $region41: #{tpu_custom_call.1} parent=1 // pred_fallthru
      _
    %247 = vsyncpa [#allocation5], 1
    %248 = vsyncpa [#allocation7], 1

</llo_original>
